<compile_context>
chip_gen: v6e
topology: v6e:2x2x1
jax: 0.10.0
libtpu: 0.0.40
codegen_flags: <defaults>
</compile_context>

<pallas_src>
import functools
import math

import jax
import jax.numpy as jnp
from jax import lax
from jax.experimental import pallas as pl
from jax.experimental.pallas import tpu as pltpu

_NEG_BIG = -1e30                      # finite "minus infinity" (safe when tiling)
_VMEM_LIMIT = 64 * 1024 * 1024        # explicit scoped-VMEM budget (fits v7x)


def _layernorm_f32(x, g, b, eps):
    mu = jnp.mean(x, axis=-1, keepdims=True)
    var = jnp.mean((x - mu) ** 2, axis=-1, keepdims=True)
    return (x - mu) * lax.rsqrt(var + eps) * g + b


# ---------------------------------------------------------------------------
# Kernel 1: pre-LN + fused QKV projection.  Output layout (B, H, T, D) bf16.
# ---------------------------------------------------------------------------
def _ln_qkv_kernel(x_ref, g_ref, b_ref, wqkv_ref, q_ref, k_ref, v_ref,
                   *, H, D, eps):
    x = x_ref[0].astype(jnp.float32)                               # (tt, C)
    h = _layernorm_f32(x, g_ref[...], b_ref[...], eps)
    qkv = jnp.dot(h.astype(jnp.bfloat16), wqkv_ref[...],
                  preferred_element_type=jnp.float32)              # (tt, 3C) f32
    C = H * D
    # Static unrolled head loop: contiguous D-wide lane slices, no 3-D transposes.
    for hh in range(H):
        q_ref[0, hh] = qkv[:, hh * D:(hh + 1) * D].astype(jnp.bfloat16)
        k_ref[0, hh] = qkv[:, C + hh * D:C + (hh + 1) * D].astype(jnp.bfloat16)
        v_ref[0, hh] = qkv[:, 2 * C + hh * D:2 * C + (hh + 1) * D].astype(jnp.bfloat16)


# ---------------------------------------------------------------------------
# Kernel 2: causal flash attention (online softmax over KV tiles).
# ---------------------------------------------------------------------------
def _flash_attn_kernel(q_ref, k_ref, v_ref, o_ref, m_ref, l_ref, acc_ref,
                       *, tq, tk, scale):
    ki = pl.program_id(3)
    q_start = pl.program_id(2) * tq
    kv_start = ki * tk

    @pl.when(ki == 0)
    def _init():
        m_ref[...] = jnp.full_like(m_ref, _NEG_BIG)
        l_ref[...] = jnp.zeros_like(l_ref)
        acc_ref[...] = jnp.zeros_like(acc_ref)

    # Skip KV tiles that lie entirely above the causal diagonal.
    @pl.when(q_start + (tq - 1) >= kv_start)
    def _update():
        q = q_ref[0, 0]                                            # (tq, D) bf16
        k = k_ref[0, 0]                                            # (tk, D) bf16
        v = v_ref[0, 0]                                            # (tk, D) bf16
        # q @ k^T without an explicit transpose ("nt" contraction on the MXU).
        s = lax.dot_general(q, k, (((1,), (1,)), ((), ())),
                            preferred_element_type=jnp.float32) * scale   # (tq, tk)
        rows = q_start + lax.broadcasted_iota(jnp.int32, (tq, tk), 0)
        cols = kv_start + lax.broadcasted_iota(jnp.int32, (tq, tk), 1)
        s = jnp.where(rows >= cols, s, _NEG_BIG)

        m_prev = m_ref[...]
        m_new = jnp.maximum(m_prev, jnp.max(s, axis=-1, keepdims=True))
        alpha = jnp.exp(m_prev - m_new)
        p = jnp.exp(s - m_new)
        l_ref[...] = alpha * l_ref[...] + jnp.sum(p, axis=-1, keepdims=True)
        acc_ref[...] = alpha * acc_ref[...] + jnp.dot(
            p.astype(jnp.bfloat16), v, preferred_element_type=jnp.float32)
        m_ref[...] = m_new

    @pl.when(ki == pl.num_programs(3) - 1)
    def _finalize():
        inv_l = pl.reciprocal(l_ref[...], approx=True)             # EUP, not VPU
        o_ref[0, 0] = (acc_ref[...] * inv_l).astype(o_ref.dtype)


# ---------------------------------------------------------------------------
# Kernel 3: attention output proj + residual + LN2 + K-tiled MLP + residual.
# Grid axis 2 tiles the 4C hidden dimension (reduction, "arbitrary").
# ---------------------------------------------------------------------------
def _proj_mlp_kernel(x_ref, y_ref, wproj_ref, bproj_ref, ln2g_ref, ln2b_ref,
                     w1_ref, b1_ref, w2_ref, b2_ref, o_ref,
                     resid_ref, h2_ref, acc_ref, *, H, eps):
    n = pl.program_id(2)

    @pl.when(n == 0)
    def _init():
        x = x_ref[0].astype(jnp.float32)                           # (tt, C)
        # Reassemble heads by lane-concatenation (no 3-D transpose).
        y = jnp.concatenate([y_ref[0, hh] for hh in range(H)], axis=-1)  # (tt, C) bf16
        attn = jnp.dot(y, wproj_ref[...], preferred_element_type=jnp.float32)
        resid = x + attn + bproj_ref[...]
        resid_ref[...] = resid
        h2_ref[...] = _layernorm_f32(resid, ln2g_ref[...], ln2b_ref[...],
                                     eps).astype(jnp.bfloat16)
        acc_ref[...] = jnp.zeros_like(acc_ref)

    # One chunk of the hidden dimension: GELU(h2 @ W1[:, n]) @ W2[n, :]
    m1 = jnp.dot(h2_ref[...], w1_ref[...], preferred_element_type=jnp.float32)
    m1 = m1 + b1_ref[...]
    m1 = 0.5 * m1 * (1.0 + lax.erf(m1 * (1.0 / math.sqrt(2.0))))   # exact GELU
    acc_ref[...] += jnp.dot(m1.astype(jnp.bfloat16), w2_ref[...],
                            preferred_element_type=jnp.float32)

    @pl.when(n == pl.num_programs(2) - 1)
    def _finalize():
        o_ref[0] = (resid_ref[...] + acc_ref[...] + b2_ref[...]).astype(o_ref.dtype)


# ---------------------------------------------------------------------------
# Wrapper
# ---------------------------------------------------------------------------
def _tile(total, pref):
    return pref if (total >= pref and total % pref == 0) else total


def transformer_block(x, params, *, n_head, eps=1e-5,
                      q_tile=256, kv_tile=256, mlp_tile=512):
    B, T, C = x.shape
    H = n_head
    D = C // H
    Hd = 4 * C

    tt = _tile(T, q_tile)        # query / sequence tile
    tk = _tile(T, kv_tile)       # KV tile
    tn = _tile(Hd, mlp_tile)     # MLP hidden-dim tile
    nt, nkv, nk = T // tt, T // tk, Hd // tn

    bf = jnp.bfloat16
    wqkv = params["wqkv"].astype(bf)
    wproj = params["wproj"].astype(bf)
    w1 = params["w1"].astype(bf)
    w2 = params["w2"].astype(bf)

    # ---- stage 1: LN1 + QKV projection ----
    qkv_spec = pl.BlockSpec((1, H, tt, D), lambda b, i: (b, 0, i, 0))
    q, k, v = pl.pallas_call(
        functools.partial(_ln_qkv_kernel, H=H, D=D, eps=eps),
        grid=(B, nt),
        in_specs=[
            pl.BlockSpec((1, tt, C), lambda b, i: (b, i, 0)),      # x tile
            pl.BlockSpec((1, C), lambda b, i: (0, 0)),             # ln1 gamma
            pl.BlockSpec((1, C), lambda b, i: (0, 0)),             # ln1 beta
            pl.BlockSpec((C, 3 * C), lambda b, i: (0, 0)),         # Wqkv (bf16)
        ],
        out_specs=(qkv_spec, qkv_spec, qkv_spec),
        out_shape=tuple(jax.ShapeDtypeStruct((B, H, T, D), bf) for _ in range(3)),
        compiler_params=pltpu.CompilerParams(
            dimension_semantics=("parallel", "parallel"),
            vmem_limit_bytes=_VMEM_LIMIT),
        cost_estimate=pl.CostEstimate(
            flops=2 * B * T * C * 3 * C,
            transcendentals=0,
            bytes_accessed=B * T * C * 4 + C * 3 * C * 2 + 3 * B * T * C * 2),
    )(x, params["ln1_g"], params["ln1_b"], wqkv)

    # ---- stage 2: causal flash attention ----
    scale = 1.0 / math.sqrt(D)
    y_heads = pl.pallas_call(
        functools.partial(_flash_attn_kernel, tq=tt, tk=tk, scale=scale),
        grid=(B, H, nt, nkv),
        in_specs=[
            pl.BlockSpec((1, 1, tt, D), lambda b, h, qi, ki: (b, h, qi, 0)),
            pl.BlockSpec((1, 1, tk, D), lambda b, h, qi, ki: (b, h, ki, 0)),
            pl.BlockSpec((1, 1, tk, D), lambda b, h, qi, ki: (b, h, ki, 0)),
        ],
        out_specs=pl.BlockSpec((1, 1, tt, D), lambda b, h, qi, ki: (b, h, qi, 0)),
        out_shape=jax.ShapeDtypeStruct((B, H, T, D), bf),
        scratch_shapes=[
            pltpu.VMEM((tt, 1), jnp.float32),     # running max m
            pltpu.VMEM((tt, 1), jnp.float32),     # running denom l
            pltpu.VMEM((tt, D), jnp.float32),     # output accumulator
        ],
        compiler_params=pltpu.CompilerParams(
            dimension_semantics=("parallel", "parallel", "parallel", "arbitrary"),
            vmem_limit_bytes=_VMEM_LIMIT),
        cost_estimate=pl.CostEstimate(
            flops=4 * B * H * T * T * D,
            transcendentals=B * H * T * T,
            bytes_accessed=4 * B * T * C * 2),
    )(q, k, v)

    # ---- stage 3: proj + residual + LN2 + K-tiled MLP + residual ----
    out = pl.pallas_call(
        functools.partial(_proj_mlp_kernel, H=H, eps=eps),
        grid=(B, nt, nk),
        in_specs=[
            pl.BlockSpec((1, tt, C), lambda b, i, n: (b, i, 0)),         # x (residual)
            pl.BlockSpec((1, H, tt, D), lambda b, i, n: (b, 0, i, 0)),   # attn heads
            pl.BlockSpec((C, C), lambda b, i, n: (0, 0)),                # Wproj
            pl.BlockSpec((1, C), lambda b, i, n: (0, 0)),                # bproj
            pl.BlockSpec((1, C), lambda b, i, n: (0, 0)),                # ln2 gamma
            pl.BlockSpec((1, C), lambda b, i, n: (0, 0)),                # ln2 beta
            pl.BlockSpec((C, tn), lambda b, i, n: (0, n)),               # W1 chunk
            pl.BlockSpec((1, tn), lambda b, i, n: (0, n)),               # b1 chunk
            pl.BlockSpec((tn, C), lambda b, i, n: (n, 0)),               # W2 chunk
            pl.BlockSpec((1, C), lambda b, i, n: (0, 0)),                # b2
        ],
        out_specs=pl.BlockSpec((1, tt, C), lambda b, i, n: (b, i, 0)),
        out_shape=jax.ShapeDtypeStruct((B, T, C), x.dtype),
        scratch_shapes=[
            pltpu.VMEM((tt, C), jnp.float32),    # residual after attention
            pltpu.VMEM((tt, C), jnp.bfloat16),   # LN2 output (matmul operand)
            pltpu.VMEM((tt, C), jnp.float32),    # MLP accumulator
        ],
        compiler_params=pltpu.CompilerParams(
            dimension_semantics=("parallel", "parallel", "arbitrary"),
            vmem_limit_bytes=_VMEM_LIMIT),
        cost_estimate=pl.CostEstimate(
            flops=2 * B * T * (C * C + 2 * C * Hd),
            transcendentals=B * T * Hd,
            bytes_accessed=3 * B * T * C * 4 + (C * C + 2 * C * Hd) * 2),
    )(x, y_heads, wproj, params["bproj"], params["ln2_g"], params["ln2_b"],
      w1, params["b1"], w2, params["b2"])
    return out


# ---------------------------------------------------------------------------
# Pure-JAX f32 reference (mirrors the PyTorch module, dropout = identity)
# ---------------------------------------------------------------------------
def reference_block(x, params, *, n_head):
    B, T, C = x.shape
    H, D = n_head, C // n_head

    def ln(v, g, b):
        mu = jnp.mean(v, axis=-1, keepdims=True)
        var = jnp.mean((v - mu) ** 2, axis=-1, keepdims=True)
        return (v - mu) / jnp.sqrt(var + 1e-5) * g[0] + b[0]

    h = ln(x, params["ln1_g"], params["ln1_b"])
    qkv = h @ params["wqkv"]
    q, k, v = jnp.split(qkv, 3, axis=-1)
    q = q.reshape(B, T, H, D).transpose(0, 2, 1, 3)
    k = k.reshape(B, T, H, D).transpose(0, 2, 1, 3)
    v = v.reshape(B, T, H, D).transpose(0, 2, 1, 3)
    att = jnp.einsum('bhtd,bhsd->bhts', q, k) / math.sqrt(D)
    mask = jnp.tril(jnp.ones((T, T), bool))
    att = jnp.where(mask, att, -jnp.inf)
    att = jax.nn.softmax(att, axis=-1)
    y = jnp.einsum('bhts,bhsd->bhtd', att, v).transpose(0, 2, 1, 3).reshape(B, T, C)
    x = x + y @ params["wproj"] + params["bproj"][0]
    h2 = ln(x, params["ln2_g"], params["ln2_b"])
    m1 = h2 @ params["w1"] + params["b1"][0]
    m1 = 0.5 * m1 * (1.0 + lax.erf(m1 / jnp.sqrt(2.0)))
    return x + m1 @ params["w2"] + params["b2"][0]


def init_params(key, C):
    Hd = 4 * C
    ks = jax.random.split(key, 6)
    s = 0.02
    return {
        "ln1_g": jnp.ones((1, C), jnp.float32),
        "ln1_b": jnp.zeros((1, C), jnp.float32),
        # weights stored in (in, out) layout (transposed vs. torch's (out, in))
        "wqkv": s * jax.random.normal(ks[0], (C, 3 * C), jnp.float32),
        "wproj": s * jax.random.normal(ks[1], (C, C), jnp.float32),
        "bproj": s * jax.random.normal(ks[2], (1, C), jnp.float32),
        "ln2_g": jnp.ones((1, C), jnp.float32),
        "ln2_b": jnp.zeros((1, C), jnp.float32),
        "w1": s * jax.random.normal(ks[3], (C, Hd), jnp.float32),
        "b1": jnp.zeros((1, Hd), jnp.float32),
        "w2": s * jax.random.normal(ks[4], (Hd, C), jnp.float32),
        "b2": jnp.zeros((1, C), jnp.float32),
    }


if __name__ == "__main__":
    # TODO(synk): dropout layers are treated as identity (inference / eval mode).
    B, T, C, H = 2, 8, 32, 4   # small shapes consistent with (B, T, n_embd), H | C
    key = jax.random.PRNGKey(0)
    kx, kp = jax.random.split(key)
    x = jax.random.normal(kx, (B, T, C), jnp.float32)
    params = init_params(kp, C)

    out = jax.block_until_ready(transformer_block(x, params, n_head=H))
    ref = reference_block(x, params, n_head=H)

    assert out.shape == (B, T, C)
    assert bool(jnp.all(jnp.isfinite(out)))
    # bf16 matmul operands (f32 accumulation) vs a pure-f32 reference.
    assert jnp.allclose(out, ref, rtol=2e-2, atol=2e-2), \
        f"mismatch vs reference, max abs err = {float(jnp.max(jnp.abs(out - ref)))}"
    print("KERNEL_OK")
</pallas_src>

<mosaic_0001>
module attributes {stable_mosaic.version = 11 : i64} {
  func.func @_ln_qkv_kernel(%arg0: i32, %arg1: i32, %arg2: memref<1x8x32xf32, #tpu.memory_space<vmem>>, %arg3: memref<1x32xf32, #tpu.memory_space<vmem>>, %arg4: memref<1x32xf32, #tpu.memory_space<vmem>>, %arg5: memref<32x96xbf16, #tpu.memory_space<vmem>>, %arg6: memref<1x4x8x8xbf16, #tpu.memory_space<vmem>>, %arg7: memref<1x4x8x8xbf16, #tpu.memory_space<vmem>>, %arg8: memref<1x4x8x8xbf16, #tpu.memory_space<vmem>>) attributes {dimension_semantics = [#tpu.dimension_semantics<parallel>, #tpu.dimension_semantics<parallel>], iteration_bounds = array<i64: 2, 1>, scalar_prefetch = 0 : i64, scratch_operands = 0 : i64, tpu.core_type = #tpu.core_type<tc>, window_params = [{transform_indices = @transform_0, window_bounds = array<i64: 1, 8, 32>}, {pipeline_mode = #tpu.pipeline_mode<synchronous>, transform_indices = @transform_1, window_bounds = array<i64: 1, 32>}, {pipeline_mode = #tpu.pipeline_mode<synchronous>, transform_indices = @transform_2, window_bounds = array<i64: 1, 32>}, {pipeline_mode = #tpu.pipeline_mode<synchronous>, transform_indices = @transform_3, window_bounds = array<i64: 32, 96>}, {transform_indices = @transform_4, window_bounds = array<i64: 1, 4, 8, 8>}, {transform_indices = @transform_5, window_bounds = array<i64: 1, 4, 8, 8>}, {transform_indices = @transform_6, window_bounds = array<i64: 1, 4, 8, 8>}]} {
    %c0 = arith.constant 0 : index
    %c0_0 = arith.constant 0 : index
    %c0_1 = arith.constant 0 : index
    %0 = vector.load %arg2[%c0, %c0_0, %c0_1] : memref<1x8x32xf32, #tpu.memory_space<vmem>>, vector<1x8x32xf32>
    %1 = vector.shape_cast %0 : vector<1x8x32xf32> to vector<8x32xf32>
    %c0_2 = arith.constant 0 : index
    %c0_3 = arith.constant 0 : index
    %2 = vector.load %arg3[%c0_2, %c0_3] : memref<1x32xf32, #tpu.memory_space<vmem>>, vector<1x32xf32>
    %c0_4 = arith.constant 0 : index
    %c0_5 = arith.constant 0 : index
    %3 = vector.load %arg4[%c0_4, %c0_5] : memref<1x32xf32, #tpu.memory_space<vmem>>, vector<1x32xf32>
    %cst = arith.constant dense<0.000000e+00> : vector<8xf32>
    %4 = vector.multi_reduction <add>, %1, %cst [1] : vector<8x32xf32> to vector<8xf32>
    %5 = vector.shape_cast %4 : vector<8xf32> to vector<8x1xf32>
    %cst_6 = arith.constant 3.200000e+01 : f32
    %6 = vector.broadcast %cst_6 : f32 to vector<8x1xf32>
    %7 = arith.divf %5, %6 : vector<8x1xf32>
    %8 = vector.broadcast %7 : vector<8x1xf32> to vector<8x32xf32>
    %9 = arith.subf %1, %8 : vector<8x32xf32>
    %10 = arith.mulf %9, %9 : vector<8x32xf32>
    %cst_7 = arith.constant dense<0.000000e+00> : vector<8xf32>
    %11 = vector.multi_reduction <add>, %10, %cst_7 [1] : vector<8x32xf32> to vector<8xf32>
    %12 = vector.shape_cast %11 : vector<8xf32> to vector<8x1xf32>
    %cst_8 = arith.constant 3.200000e+01 : f32
    %13 = vector.broadcast %cst_8 : f32 to vector<8x1xf32>
    %14 = arith.divf %12, %13 : vector<8x1xf32>
    %15 = vector.broadcast %7 : vector<8x1xf32> to vector<8x32xf32>
    %16 = arith.subf %1, %15 : vector<8x32xf32>
    %cst_9 = arith.constant 9.99999974E-6 : f32
    %17 = vector.broadcast %cst_9 : f32 to vector<8x1xf32>
    %18 = arith.addf %14, %17 : vector<8x1xf32>
    %19 = math.rsqrt %18 : vector<8x1xf32>
    %20 = vector.broadcast %19 : vector<8x1xf32> to vector<8x32xf32>
    %21 = arith.mulf %16, %20 : vector<8x32xf32>
    %22 = vector.broadcast %2 : vector<1x32xf32> to vector<8x32xf32>
    %23 = arith.mulf %21, %22 : vector<8x32xf32>
    %24 = vector.broadcast %3 : vector<1x32xf32> to vector<8x32xf32>
    %25 = arith.addf %23, %24 : vector<8x32xf32>
    %26 = arith.truncf %25 : vector<8x32xf32> to vector<8x32xbf16>
    %c0_10 = arith.constant 0 : index
    %c0_11 = arith.constant 0 : index
    %27 = vector.load %arg5[%c0_10, %c0_11] : memref<32x96xbf16, #tpu.memory_space<vmem>>, vector<32x96xbf16>
    %cst_12 = arith.constant dense<0.000000e+00> : vector<8x96xf32>
    %28 = tpu.matmul %26, %27, %cst_12 {dimension_numbers = #tpu.dot_dimension_numbers<[1], [0], [0], [1], [0, 0, 1, 1], [], []>} : vector<8x32xbf16>, vector<32x96xbf16>, vector<8x96xf32> -> vector<8x96xf32>
    %29 = vector.extract_strided_slice %28 {offsets = [0, 0], sizes = [8, 8], strides = [1, 1]} : vector<8x96xf32> to vector<8x8xf32>
    %30 = arith.truncf %29 : vector<8x8xf32> to vector<8x8xbf16>
    %c0_13 = arith.constant 0 : index
    %c0_14 = arith.constant 0 : index
    %c0_15 = arith.constant 0 : index
    %c0_16 = arith.constant 0 : index
    %31 = vector.load %arg6[%c0_13, %c0_14, %c0_15, %c0_16] : memref<1x4x8x8xbf16, #tpu.memory_space<vmem>>, vector<1x1x8x8xbf16>
    %32 = vector.shape_cast %31 : vector<1x1x8x8xbf16> to vector<8x8xbf16>
    %33 = vector.shape_cast %30 : vector<8x8xbf16> to vector<1x1x8x8xbf16>
    tpu.vector_store %arg6[%c0_13, %c0_14, %c0_15, %c0_16], %33 {strides = array<i32>} : memref<1x4x8x8xbf16, #tpu.memory_space<vmem>>, vector<1x1x8x8xbf16>,
    %34 = vector.extract_strided_slice %28 {offsets = [0, 32], sizes = [8, 8], strides = [1, 1]} : vector<8x96xf32> to vector<8x8xf32>
    %35 = arith.truncf %34 : vector<8x8xf32> to vector<8x8xbf16>
    %c0_17 = arith.constant 0 : index
    %c0_18 = arith.constant 0 : index
    %c0_19 = arith.constant 0 : index
    %c0_20 = arith.constant 0 : index
    %36 = vector.load %arg7[%c0_17, %c0_18, %c0_19, %c0_20] : memref<1x4x8x8xbf16, #tpu.memory_space<vmem>>, vector<1x1x8x8xbf16>
    %37 = vector.shape_cast %36 : vector<1x1x8x8xbf16> to vector<8x8xbf16>
    %38 = vector.shape_cast %35 : vector<8x8xbf16> to vector<1x1x8x8xbf16>
    tpu.vector_store %arg7[%c0_17, %c0_18, %c0_19, %c0_20], %38 {strides = array<i32>} : memref<1x4x8x8xbf16, #tpu.memory_space<vmem>>, vector<1x1x8x8xbf16>,
    %39 = vector.extract_strided_slice %28 {offsets = [0, 64], sizes = [8, 8], strides = [1, 1]} : vector<8x96xf32> to vector<8x8xf32>
    %40 = arith.truncf %39 : vector<8x8xf32> to vector<8x8xbf16>
    %c0_21 = arith.constant 0 : index
    %c0_22 = arith.constant 0 : index
    %c0_23 = arith.constant 0 : index
    %c0_24 = arith.constant 0 : index
    %41 = vector.load %arg8[%c0_21, %c0_22, %c0_23, %c0_24] : memref<1x4x8x8xbf16, #tpu.memory_space<vmem>>, vector<1x1x8x8xbf16>
    %42 = vector.shape_cast %41 : vector<1x1x8x8xbf16> to vector<8x8xbf16>
    %43 = vector.shape_cast %40 : vector<8x8xbf16> to vector<1x1x8x8xbf16>
    tpu.vector_store %arg8[%c0_21, %c0_22, %c0_23, %c0_24], %43 {strides = array<i32>} : memref<1x4x8x8xbf16, #tpu.memory_space<vmem>>, vector<1x1x8x8xbf16>,
    %44 = vector.extract_strided_slice %28 {offsets = [0, 8], sizes = [8, 8], strides = [1, 1]} : vector<8x96xf32> to vector<8x8xf32>
    %45 = arith.truncf %44 : vector<8x8xf32> to vector<8x8xbf16>
    %c0_25 = arith.constant 0 : index
    %c1 = arith.constant 1 : index
    %c0_26 = arith.constant 0 : index
    %c0_27 = arith.constant 0 : index
    %46 = vector.load %arg6[%c0_25, %c1, %c0_26, %c0_27] : memref<1x4x8x8xbf16, #tpu.memory_space<vmem>>, vector<1x1x8x8xbf16>
    %47 = vector.shape_cast %46 : vector<1x1x8x8xbf16> to vector<8x8xbf16>
    %48 = vector.shape_cast %45 : vector<8x8xbf16> to vector<1x1x8x8xbf16>
    tpu.vector_store %arg6[%c0_25, %c1, %c0_26, %c0_27], %48 {strides = array<i32>} : memref<1x4x8x8xbf16, #tpu.memory_space<vmem>>, vector<1x1x8x8xbf16>,
    %49 = vector.extract_strided_slice %28 {offsets = [0, 40], sizes = [8, 8], strides = [1, 1]} : vector<8x96xf32> to vector<8x8xf32>
    %50 = arith.truncf %49 : vector<8x8xf32> to vector<8x8xbf16>
    %c0_28 = arith.constant 0 : index
    %c1_29 = arith.constant 1 : index
    %c0_30 = arith.constant 0 : index
    %c0_31 = arith.constant 0 : index
    %51 = vector.load %arg7[%c0_28, %c1_29, %c0_30, %c0_31] : memref<1x4x8x8xbf16, #tpu.memory_space<vmem>>, vector<1x1x8x8xbf16>
    %52 = vector.shape_cast %51 : vector<1x1x8x8xbf16> to vector<8x8xbf16>
    %53 = vector.shape_cast %50 : vector<8x8xbf16> to vector<1x1x8x8xbf16>
    tpu.vector_store %arg7[%c0_28, %c1_29, %c0_30, %c0_31], %53 {strides = array<i32>} : memref<1x4x8x8xbf16, #tpu.memory_space<vmem>>, vector<1x1x8x8xbf16>,
    %54 = vector.extract_strided_slice %28 {offsets = [0, 72], sizes = [8, 8], strides = [1, 1]} : vector<8x96xf32> to vector<8x8xf32>
    %55 = arith.truncf %54 : vector<8x8xf32> to vector<8x8xbf16>
    %c0_32 = arith.constant 0 : index
    %c1_33 = arith.constant 1 : index
    %c0_34 = arith.constant 0 : index
    %c0_35 = arith.constant 0 : index
    %56 = vector.load %arg8[%c0_32, %c1_33, %c0_34, %c0_35] : memref<1x4x8x8xbf16, #tpu.memory_space<vmem>>, vector<1x1x8x8xbf16>
    %57 = vector.shape_cast %56 : vector<1x1x8x8xbf16> to vector<8x8xbf16>
    %58 = vector.shape_cast %55 : vector<8x8xbf16> to vector<1x1x8x8xbf16>
    tpu.vector_store %arg8[%c0_32, %c1_33, %c0_34, %c0_35], %58 {strides = array<i32>} : memref<1x4x8x8xbf16, #tpu.memory_space<vmem>>, vector<1x1x8x8xbf16>,
    %59 = vector.extract_strided_slice %28 {offsets = [0, 16], sizes = [8, 8], strides = [1, 1]} : vector<8x96xf32> to vector<8x8xf32>
    %60 = arith.truncf %59 : vector<8x8xf32> to vector<8x8xbf16>
    %c0_36 = arith.constant 0 : index
    %c2 = arith.constant 2 : index
    %c0_37 = arith.constant 0 : index
    %c0_38 = arith.constant 0 : index
    %61 = vector.load %arg6[%c0_36, %c2, %c0_37, %c0_38] : memref<1x4x8x8xbf16, #tpu.memory_space<vmem>>, vector<1x1x8x8xbf16>
    %62 = vector.shape_cast %61 : vector<1x1x8x8xbf16> to vector<8x8xbf16>
    %63 = vector.shape_cast %60 : vector<8x8xbf16> to vector<1x1x8x8xbf16>
    tpu.vector_store %arg6[%c0_36, %c2, %c0_37, %c0_38], %63 {strides = array<i32>} : memref<1x4x8x8xbf16, #tpu.memory_space<vmem>>, vector<1x1x8x8xbf16>,
    %64 = vector.extract_strided_slice %28 {offsets = [0, 48], sizes = [8, 8], strides = [1, 1]} : vector<8x96xf32> to vector<8x8xf32>
    %65 = arith.truncf %64 : vector<8x8xf32> to vector<8x8xbf16>
    %c0_39 = arith.constant 0 : index
    %c2_40 = arith.constant 2 : index
    %c0_41 = arith.constant 0 : index
    %c0_42 = arith.constant 0 : index
    %66 = vector.load %arg7[%c0_39, %c2_40, %c0_41, %c0_42] : memref<1x4x8x8xbf16, #tpu.memory_space<vmem>>, vector<1x1x8x8xbf16>
    %67 = vector.shape_cast %66 : vector<1x1x8x8xbf16> to vector<8x8xbf16>
    %68 = vector.shape_cast %65 : vector<8x8xbf16> to vector<1x1x8x8xbf16>
    tpu.vector_store %arg7[%c0_39, %c2_40, %c0_41, %c0_42], %68 {strides = array<i32>} : memref<1x4x8x8xbf16, #tpu.memory_space<vmem>>, vector<1x1x8x8xbf16>,
    %69 = vector.extract_strided_slice %28 {offsets = [0, 80], sizes = [8, 8], strides = [1, 1]} : vector<8x96xf32> to vector<8x8xf32>
    %70 = arith.truncf %69 : vector<8x8xf32> to vector<8x8xbf16>
    %c0_43 = arith.constant 0 : index
    %c2_44 = arith.constant 2 : index
    %c0_45 = arith.constant 0 : index
    %c0_46 = arith.constant 0 : index
    %71 = vector.load %arg8[%c0_43, %c2_44, %c0_45, %c0_46] : memref<1x4x8x8xbf16, #tpu.memory_space<vmem>>, vector<1x1x8x8xbf16>
    %72 = vector.shape_cast %71 : vector<1x1x8x8xbf16> to vector<8x8xbf16>
    %73 = vector.shape_cast %70 : vector<8x8xbf16> to vector<1x1x8x8xbf16>
    tpu.vector_store %arg8[%c0_43, %c2_44, %c0_45, %c0_46], %73 {strides = array<i32>} : memref<1x4x8x8xbf16, #tpu.memory_space<vmem>>, vector<1x1x8x8xbf16>,
    %74 = vector.extract_strided_slice %28 {offsets = [0, 24], sizes = [8, 8], strides = [1, 1]} : vector<8x96xf32> to vector<8x8xf32>
    %75 = arith.truncf %74 : vector<8x8xf32> to vector<8x8xbf16>
    %c0_47 = arith.constant 0 : index
    %c3 = arith.constant 3 : index
    %c0_48 = arith.constant 0 : index
    %c0_49 = arith.constant 0 : index
    %76 = vector.load %arg6[%c0_47, %c3, %c0_48, %c0_49] : memref<1x4x8x8xbf16, #tpu.memory_space<vmem>>, vector<1x1x8x8xbf16>
    %77 = vector.shape_cast %76 : vector<1x1x8x8xbf16> to vector<8x8xbf16>
    %78 = vector.shape_cast %75 : vector<8x8xbf16> to vector<1x1x8x8xbf16>
    tpu.vector_store %arg6[%c0_47, %c3, %c0_48, %c0_49], %78 {strides = array<i32>} : memref<1x4x8x8xbf16, #tpu.memory_space<vmem>>, vector<1x1x8x8xbf16>,
    %79 = vector.extract_strided_slice %28 {offsets = [0, 56], sizes = [8, 8], strides = [1, 1]} : vector<8x96xf32> to vector<8x8xf32>
    %80 = arith.truncf %79 : vector<8x8xf32> to vector<8x8xbf16>
    %c0_50 = arith.constant 0 : index
    %c3_51 = arith.constant 3 : index
    %c0_52 = arith.constant 0 : index
    %c0_53 = arith.constant 0 : index
    %81 = vector.load %arg7[%c0_50, %c3_51, %c0_52, %c0_53] : memref<1x4x8x8xbf16, #tpu.memory_space<vmem>>, vector<1x1x8x8xbf16>
    %82 = vector.shape_cast %81 : vector<1x1x8x8xbf16> to vector<8x8xbf16>
    %83 = vector.shape_cast %80 : vector<8x8xbf16> to vector<1x1x8x8xbf16>
    tpu.vector_store %arg7[%c0_50, %c3_51, %c0_52, %c0_53], %83 {strides = array<i32>} : memref<1x4x8x8xbf16, #tpu.memory_space<vmem>>, vector<1x1x8x8xbf16>,
    %84 = vector.extract_strided_slice %28 {offsets = [0, 88], sizes = [8, 8], strides = [1, 1]} : vector<8x96xf32> to vector<8x8xf32>
    %85 = arith.truncf %84 : vector<8x8xf32> to vector<8x8xbf16>
    %c0_54 = arith.constant 0 : index
    %c3_55 = arith.constant 3 : index
    %c0_56 = arith.constant 0 : index
    %c0_57 = arith.constant 0 : index
    %86 = vector.load %arg8[%c0_54, %c3_55, %c0_56, %c0_57] : memref<1x4x8x8xbf16, #tpu.memory_space<vmem>>, vector<1x1x8x8xbf16>
    %87 = vector.shape_cast %86 : vector<1x1x8x8xbf16> to vector<8x8xbf16>
    %88 = vector.shape_cast %85 : vector<8x8xbf16> to vector<1x1x8x8xbf16>
    tpu.vector_store %arg8[%c0_54, %c3_55, %c0_56, %c0_57], %88 {strides = array<i32>} : memref<1x4x8x8xbf16, #tpu.memory_space<vmem>>, vector<1x1x8x8xbf16>,
    return
  }
  func.func @transform_0(%arg0: i32, %arg1: i32) -> (i32, i32, i32) {
    %c0_i32 = arith.constant 0 : i32
    %c0_i32_0 = arith.constant 0 : i32
    return %arg0, %arg1, %c0_i32 : i32, i32, i32
  }
  func.func @transform_1(%arg0: i32, %arg1: i32) -> (i32, i32) {
    %c0_i32 = arith.constant 0 : i32
    %c0_i32_0 = arith.constant 0 : i32
    %c0_i32_1 = arith.constant 0 : i32
    return %c0_i32, %c0_i32_0 : i32, i32
  }
  func.func @transform_2(%arg0: i32, %arg1: i32) -> (i32, i32) {
    %c0_i32 = arith.constant 0 : i32
    %c0_i32_0 = arith.constant 0 : i32
    %c0_i32_1 = arith.constant 0 : i32
    return %c0_i32, %c0_i32_0 : i32, i32
  }
  func.func @transform_3(%arg0: i32, %arg1: i32) -> (i32, i32) {
    %c0_i32 = arith.constant 0 : i32
    %c0_i32_0 = arith.constant 0 : i32
    %c0_i32_1 = arith.constant 0 : i32
    return %c0_i32, %c0_i32_0 : i32, i32
  }
  func.func @transform_4(%arg0: i32, %arg1: i32) -> (i32, i32, i32, i32) {
    %c0_i32 = arith.constant 0 : i32
    %c0_i32_0 = arith.constant 0 : i32
    %c0_i32_1 = arith.constant 0 : i32
    return %arg0, %c0_i32, %arg1, %c0_i32_0 : i32, i32, i32, i32
  }
  func.func @transform_5(%arg0: i32, %arg1: i32) -> (i32, i32, i32, i32) {
    %c0_i32 = arith.constant 0 : i32
    %c0_i32_0 = arith.constant 0 : i32
    %c0_i32_1 = arith.constant 0 : i32
    return %arg0, %c0_i32, %arg1, %c0_i32_0 : i32, i32, i32, i32
  }
  func.func @transform_6(%arg0: i32, %arg1: i32) -> (i32, i32, i32, i32) {
    %c0_i32 = arith.constant 0 : i32
    %c0_i32_0 = arith.constant 0 : i32
    %c0_i32_1 = arith.constant 0 : i32
    return %arg0, %c0_i32, %arg1, %c0_i32_0 : i32, i32, i32, i32
  }
}

</mosaic_0001>

<llo_original>
// kernel: tpu_custom_call.1
$region0: #{tpu_custom_call.1}
  #allocation0 [shape = 'u32[]', space=smem, size = 0x4, offset = 0x4, fixed_abs, tag = 'smem constant byte address 0x4 - core index']
  #allocation1 [shape = 'u32[144,128]{1,0:T(1,128)}', space=vmem, size = 0x12000, scoped, tag = 'internal scratch']
  %s0 = inlined_call_operand.hbm [shape: f32[2,8,32], index: 0, kind: input, shape index: {}]
  %s1 = inlined_call_operand.vmem [shape: f32[1,32], index: 1, kind: input, shape index: {}]
  %s2 = inlined_call_operand.vmem [shape: f32[1,32], index: 2, kind: input, shape index: {}]
  %s3 = inlined_call_operand.hbm [shape: bf16[32,96], index: 3, kind: input, shape index: {}]
  %s4 = inlined_call_operand.hbm [shape: bf16[2,4,8,8], index: 4, kind: output, shape index: {0}]
  %s5 = inlined_call_operand.hbm [shape: bf16[2,4,8,8], index: 5, kind: output, shape index: {1}]
  %s6 = inlined_call_operand.hbm [shape: bf16[2,4,8,8], index: 6, kind: output, shape index: {2}]
  %7 = xla_tuple %s4, %s5, %s6
  %s8 = sld [smem:[#allocation0]]
  $region73: #{tpu_custom_call.1} parent=0
    _
  %s10 = ssub.s32 1, %s8
  %s11 = scalar_select 0, %s10, %s8
  $region1: #{tpu_custom_call.1} parent=0
    #allocation2 [shape = 'u8[8192]{0}', space=vmem, size = 0x2000, scoped, tag = 'input window, operand 0']
    #allocation3 [shape = 's32[2]{0}', space=sflag, size = 0x8, scoped, tag = 'scoped memory for tpu_custom_call.1']
    #allocation4 [shape = 's32[2]{0}', space=sflag, size = 0x8, scoped, tag = 'scoped memory for tpu_custom_call.1']
    #allocation5 [shape = 'u8[8192]{0}', space=vmem, size = 0x2000, scoped, tag = 'input window, operand 3, single buffered']
    #allocation6 [shape = 's32[1]{0}', space=sflag, size = 0x4, scoped, tag = 'scoped memory for tpu_custom_call.1']
    #allocation7 [shape = 'u8[16384]{0}', space=vmem, size = 0x4000, scoped, tag = 'output window, operand 0']
    #allocation8 [shape = 'u8[16384]{0}', space=vmem, size = 0x4000, scoped, tag = 'output window, operand 1']
    #allocation9 [shape = 's32[2]{0}', space=sflag, size = 0x8, scoped, tag = 'scoped memory for tpu_custom_call.1']
    #allocation10 [shape = 'u8[16384]{0}', space=vmem, size = 0x4000, scoped, tag = 'output window, operand 2']
    %12 = vsyncpa [#allocation3], 0
    %s13 = scalar_lea.sflag [#allocation3], 1
    %14 = vsyncpa %s13, 0
    %15 = vsyncpa [#allocation6], 0
    %16 = vsyncpa [#allocation4], 0
    %s17 = scalar_lea.sflag [#allocation4], 1
    %18 = vsyncpa %s17, 0
    %19 = vsyncpa [#allocation9], 0
    %s20 = scalar_lea.sflag [#allocation9], 1
    %21 = vsyncpa %s20, 0
    loop: start=0, step=1, limit=4
    $region2: #{tpu_custom_call.1} parent=1 // loop_pre_header
      _
    $region3: #{tpu_custom_call.1} parent=1 // loop_header
      %s23 = sphi 0, %s27
      %p24 = scmp.ge.s32.totalorder %s23, 4
      %s30 = sphi 0, %s42
      %s31 = sphi 0, %s38
      %s32 = sphi 0, %s30
      %s33 = sphi 0, %s31
      %s34 = sphi 0, %s32
      %s35 = sphi 0, %s33
      %s47 = sphi 0, %s49
      %s50 = sphi 0, %s47
      %s51 = sphi 0, %s50
      %s67 = sphi 0, %s51
      %s71 = sphi 0, %s71
      %s73 = sphi 0, %s71
      %s74 = sphi 0, %s73
      %s88 = sphi 0, %s74
      %s92 = sphi 0, %s92
      %s94 = sphi 0, %s92
      %s95 = sphi 0, %s94
      %s109 = sphi 0, %s95
      %s113 = sphi 0, %s113
      %s115 = sphi 0, %s113
      %s116 = sphi 0, %s115
      %s130 = sphi 0, %s116
      %s138 = sphi 0, %s140
      %s141 = sphi 0, %s138
      %s142 = sphi 0, %s141
      %s158 = sphi 0, %s142
      %s166 = sphi 0, %s168
      %s169 = sphi 0, %s166
      %s170 = sphi 0, %s169
      %s186 = sphi 0, %s170
      %s194 = sphi 0, %s196
      %s197 = sphi 0, %s194
      %s198 = sphi 0, %s197
      %s214 = sphi 0, %s198
    $region4: #{tpu_custom_call.1} parent=1 // loop_header_branch
      %26 = sbr.rel (%p24) target = $region8
    $region5: #{tpu_custom_call.1} parent=1 // loop_body
      %s28 = ssub.s32 %s23, 1
      %s29 = ssub.s32 %s23, 2
      %s36 = sadd.s32 1, %s31
      %p37 = scmp.ge.s32.totalorder %s36, 1
      %s38 = scalar_select %p37, 0, %s36
      %s39 = sadd.s32 1, %s30
      %s40 = scalar_select %p37, %s39, %s30
      %p41 = scmp.ge.s32.totalorder %s40, 2
      %s42 = scalar_select %p41, 0, %s40
      %s43 = ssub.s32 %s30, %s42
      %s44 = ssub.s32 %s31, %s38
      %s45 = sor.u32 %s43, %s44
      %p46 = scmp.eq.s32.totalorder %s45, 0
      %s48 = sadd.s32 %s47, 1
      %s49 = scalar_select %p46, %s47, %s48
      %p52 = pneg %p46
      %p53 = scmp.eq.s32.totalorder %s23, 1
      %p54 = por %p52, %p53
      %p55 = scmp.ne.s32.totalorder %s47, %s50
      %p56 = scmp.eq.s32.totalorder %s23, 0
      %p57 = por %p55, %p56
      %p58 = scmp.ne.s32.totalorder %s47, %s50
      %p59 = scmp.eq.s32.totalorder %s28, 1
      %p60 = por %p58, %p59
      %p61 = scmp.ne.s32.totalorder %s50, %s51
      %p62 = scmp.eq.s32.totalorder %s28, 0
      %p63 = por %p61, %p62
      %p64 = scmp.ne.s32.totalorder %s50, %s51
      %p65 = scmp.eq.s32.totalorder %s29, 1
      %p66 = por %p64, %p65
      %p68 = scmp.ne.s32.totalorder %s51, %s67
      %p69 = scmp.eq.s32.totalorder %s29, 0
      %p70 = por %p68, %p69
      %s72 = sadd.s32 %s71, 1
      %p75 = scmp.eq.s32.totalorder %s23, 1
      %p76 = scmp.ne.s32.totalorder %s71, %s73
      %p77 = scmp.eq.s32.totalorder %s23, 0
      %p78 = por %p76, %p77
      %p79 = scmp.ne.s32.totalorder %s71, %s73
      %p80 = scmp.eq.s32.totalorder %s28, 1
      %p81 = por %p79, %p80
      %p82 = scmp.ne.s32.totalorder %s73, %s74
      %p83 = scmp.eq.s32.totalorder %s28, 0
      %p84 = por %p82, %p83
      %p85 = scmp.ne.s32.totalorder %s73, %s74
      %p86 = scmp.eq.s32.totalorder %s29, 1
      %p87 = por %p85, %p86
      %p89 = scmp.ne.s32.totalorder %s74, %s88
      %p90 = scmp.eq.s32.totalorder %s29, 0
      %p91 = por %p89, %p90
      %s93 = sadd.s32 %s92, 1
      %p96 = scmp.eq.s32.totalorder %s23, 1
      %p97 = scmp.ne.s32.totalorder %s92, %s94
      %p98 = scmp.eq.s32.totalorder %s23, 0
      %p99 = por %p97, %p98
      %p100 = scmp.ne.s32.totalorder %s92, %s94
      %p101 = scmp.eq.s32.totalorder %s28, 1
      %p102 = por %p100, %p101
      %p103 = scmp.ne.s32.totalorder %s94, %s95
      %p104 = scmp.eq.s32.totalorder %s28, 0
      %p105 = por %p103, %p104
      %p106 = scmp.ne.s32.totalorder %s94, %s95
      %p107 = scmp.eq.s32.totalorder %s29, 1
      %p108 = por %p106, %p107
      %p110 = scmp.ne.s32.totalorder %s95, %s109
      %p111 = scmp.eq.s32.totalorder %s29, 0
      %p112 = por %p110, %p111
      %s114 = sadd.s32 %s113, 1
      %p117 = scmp.eq.s32.totalorder %s23, 1
      %p118 = scmp.ne.s32.totalorder %s113, %s115
      %p119 = scmp.eq.s32.totalorder %s23, 0
      %p120 = por %p118, %p119
      %p121 = scmp.ne.s32.totalorder %s113, %s115
      %p122 = scmp.eq.s32.totalorder %s28, 1
      %p123 = por %p121, %p122
      %p124 = scmp.ne.s32.totalorder %s115, %s116
      %p125 = scmp.eq.s32.totalorder %s28, 0
      %p126 = por %p124, %p125
      %p127 = scmp.ne.s32.totalorder %s115, %s116
      %p128 = scmp.eq.s32.totalorder %s29, 1
      %p129 = por %p127, %p128
      %p131 = scmp.ne.s32.totalorder %s116, %s130
      %p132 = scmp.eq.s32.totalorder %s29, 0
      %p133 = por %p131, %p132
      %s134 = ssub.s32 %s30, %s42
      %s135 = ssub.s32 %s31, %s38
      %s136 = sor.u32 %s134, %s135
      %p137 = scmp.eq.s32.totalorder %s136, 0
      %s139 = sadd.s32 %s138, 1
      %s140 = scalar_select %p137, %s138, %s139
      %p143 = pneg %p137
      %p144 = scmp.eq.s32.totalorder %s23, 1
      %p145 = por %p143, %p144
      %p146 = scmp.ne.s32.totalorder %s138, %s141
      %p147 = scmp.eq.s32.totalorder %s23, 0
      %p148 = por %p146, %p147
      %p149 = scmp.ne.s32.totalorder %s138, %s141
      %p150 = scmp.eq.s32.totalorder %s28, 1
      %p151 = por %p149, %p150
      %p152 = scmp.ne.s32.totalorder %s141, %s142
      %p153 = scmp.eq.s32.totalorder %s28, 0
      %p154 = por %p152, %p153
      %p155 = scmp.ne.s32.totalorder %s141, %s142
      %p156 = scmp.eq.s32.totalorder %s29, 1
      %p157 = por %p155, %p156
      %p159 = scmp.ne.s32.totalorder %s142, %s158
      %p160 = scmp.eq.s32.totalorder %s29, 0
      %p161 = por %p159, %p160
      %s162 = ssub.s32 %s30, %s42
      %s163 = ssub.s32 %s31, %s38
      %s164 = sor.u32 %s162, %s163
      %p165 = scmp.eq.s32.totalorder %s164, 0
      %s167 = sadd.s32 %s166, 1
      %s168 = scalar_select %p165, %s166, %s167
      %p171 = pneg %p165
      %p172 = scmp.eq.s32.totalorder %s23, 1
      %p173 = por %p171, %p172
      %p174 = scmp.ne.s32.totalorder %s166, %s169
      %p175 = scmp.eq.s32.totalorder %s23, 0
      %p176 = por %p174, %p175
      %p177 = scmp.ne.s32.totalorder %s166, %s169
      %p178 = scmp.eq.s32.totalorder %s28, 1
      %p179 = por %p177, %p178
      %p180 = scmp.ne.s32.totalorder %s169, %s170
      %p181 = scmp.eq.s32.totalorder %s28, 0
      %p182 = por %p180, %p181
      %p183 = scmp.ne.s32.totalorder %s169, %s170
      %p184 = scmp.eq.s32.totalorder %s29, 1
      %p185 = por %p183, %p184
      %p187 = scmp.ne.s32.totalorder %s170, %s186
      %p188 = scmp.eq.s32.totalorder %s29, 0
      %p189 = por %p187, %p188
      %s190 = ssub.s32 %s30, %s42
      %s191 = ssub.s32 %s31, %s38
      %s192 = sor.u32 %s190, %s191
      %p193 = scmp.eq.s32.totalorder %s192, 0
      %s195 = sadd.s32 %s194, 1
      %s196 = scalar_select %p193, %s194, %s195
      %p199 = pneg %p193
      %p200 = scmp.eq.s32.totalorder %s23, 1
      %p201 = por %p199, %p200
      %p202 = scmp.ne.s32.totalorder %s194, %s197
      %p203 = scmp.eq.s32.totalorder %s23, 0
      %p204 = por %p202, %p203
      %p205 = scmp.ne.s32.totalorder %s194, %s197
      %p206 = scmp.eq.s32.totalorder %s28, 1
      %p207 = por %p205, %p206
      %p208 = scmp.ne.s32.totalorder %s197, %s198
      %p209 = scmp.eq.s32.totalorder %s28, 0
      %p210 = por %p208, %p209
      %p211 = scmp.ne.s32.totalorder %s197, %s198
      %p212 = scmp.eq.s32.totalorder %s29, 1
      %p213 = por %p211, %p212
      %p215 = scmp.ne.s32.totalorder %s198, %s214
      %p216 = scmp.eq.s32.totalorder %s29, 0
      %p217 = por %p215, %p216
      %p218 = scmp.le.s32.totalorder 1, %s23
      %p219 = scmp.lt.s32.totalorder %s23, 3
      %p220 = pnand %p218, %p219
      %p221 = pneg %p220
      // Predicated region
      $region9: #{tpu_custom_call.1} parent=5 // pred_check
        _
      $region10: #{tpu_custom_call.1} parent=5 // pred_check_branch
        %223 = sbr.rel (%p220) target = $region12
      $region11: #{tpu_custom_call.1} parent=5 // pred_region
        %s224 = ssub.s32 %s23, 1
        // Predicated region
        $region13: #{tpu_custom_call.1} parent=11 // pred_check
          %p225 = pneg %p84
        $region14: #{tpu_custom_call.1} parent=11 // pred_check_branch
          %227 = sbr.rel (%p225) target = $region16
        $region15: #{tpu_custom_call.1} parent=11 // pred_region
          _
        $region16: #{tpu_custom_call.1} parent=11 // pred_fallthru
          _
        // Predicated region
        $region17: #{tpu_custom_call.1} parent=11 // pred_check
          %p228 = pneg %p105
        $region18: #{tpu_custom_call.1} parent=11 // pred_check_branch
          %230 = sbr.rel (%p228) target = $region20
        $region19: #{tpu_custom_call.1} parent=11 // pred_region
          _
        $region20: #{tpu_custom_call.1} parent=11 // pred_fallthru
          _
        // Predicated region
        $region21: #{tpu_custom_call.1} parent=11 // pred_check
          %p231 = pneg %p126
        $region22: #{tpu_custom_call.1} parent=11 // pred_check_branch
          %233 = sbr.rel (%p231) target = $region24
        $region23: #{tpu_custom_call.1} parent=11 // pred_region
          %s235 = ssub.s32 256, 256
          %236 = vsyncadd [#allocation6], %s235
          %s237 = sshll.u32 [#allocation5], 4
          %s238 = int_to_ptr.vmem [resolvable:$true] %s237
          %243 = dma.hbm_to_vmem [thread:$0]  %s3, 256, %s238, [#allocation6], 64, 64, 4
        $region24: #{tpu_custom_call.1} parent=11 // pred_fallthru
          _
      $region12: #{tpu_custom_call.1} parent=5 // pred_fallthru
        _
      %p244 = scmp.lt.s32.totalorder %s23, 2
      // Predicated region
      $region25: #{tpu_custom_call.1} parent=5 // pred_check
        %p245 = pneg %p244
      $region26: #{tpu_custom_call.1} parent=5 // pred_check_branch
        %247 = sbr.rel (%p245) target = $region28
      $region27: #{tpu_custom_call.1} parent=5 // pred_region
        // Predicated region
        $region29: #{tpu_custom_call.1} parent=27 // pred_check
          %p248 = pneg %p57
        $region30: #{tpu_custom_call.1} parent=27 // pred_check_branch
          %250 = sbr.rel (%p248) target = $region32
        $region31: #{tpu_custom_call.1} parent=27 // pred_region
          %s251 = sand.u32 %s47, 1
          %s252 = scalar_lea.sflag [#allocation3], %s251
          %s253 = sand.u32 %s47, 1
          %s254 = smul.addr %s253, 8
          %s255 = scalar_lea.vmem [#allocation2], %s254
          %s257 = ssub.s32 128, 128
          %258 = vsyncadd %s252, %s257
          %s259 = sadd.s32 %s31, %s30
          %s260 = smul.addr %s259, 128
          %s261 = scalar_lea.hbm %s0, %s260
          %s263 = sshll.u32 %s255, 4
          %s264 = int_to_ptr.vmem [resolvable:$true] %s263
          %266 = dma.hbm_to_vmem [thread:$0]  %s261, 128, %s264, %s252
        $region32: #{tpu_custom_call.1} parent=27 // pred_fallthru
          _
      $region28: #{tpu_custom_call.1} parent=5 // pred_fallthru
        _
      %p267 = scmp.le.s32.totalorder 1, %s23
      %p268 = scmp.lt.s32.totalorder %s23, 3
      %p269 = pnand %p267, %p268
      %p270 = pneg %p269
      // Predicated region
      $region33: #{tpu_custom_call.1} parent=5 // pred_check
        _
      $region34: #{tpu_custom_call.1} parent=5 // pred_check_branch
        %272 = sbr.rel (%p269) target = $region36
      $region35: #{tpu_custom_call.1} parent=5 // pred_region
        %s273 = ssub.s32 %s23, 1
        %s274 = sand.u32 %s50, 1
        %s275 = scalar_lea.sflag [#allocation3], %s274
        %s276 = sand.u32 %s50, 1
        %s277 = smul.addr %s276, 8
        %s278 = scalar_lea.vmem [#allocation2], %s277
        // Predicated region
        $region37: #{tpu_custom_call.1} parent=35 // pred_check
          %p279 = pneg %p63
        $region38: #{tpu_custom_call.1} parent=35 // pred_check_branch
          %281 = sbr.rel (%p279) target = $region40
        $region39: #{tpu_custom_call.1} parent=35 // pred_region
          %282 = dma.done %s275, 128
        $region40: #{tpu_custom_call.1} parent=35 // pred_fallthru
          _
        // Predicated region
        $region41: #{tpu_custom_call.1} parent=35 // pred_check
          %p283 = pneg %p126
        $region42: #{tpu_custom_call.1} parent=35 // pred_check_branch
          %285 = sbr.rel (%p283) target = $region44
        $region43: #{tpu_custom_call.1} parent=35 // pred_region
          %286 = dma.done [#allocation6], 256
        $region44: #{tpu_custom_call.1} parent=35 // pred_fallthru
          _
        %s287 = sand.u32 %s50, 1
        %s288 = scalar_lea.sflag [#allocation3], %s287
        %s289 = sand.u32 %s50, 1
        %s290 = smul.addr %s289, 8
        %s291 = scalar_lea.vmem [#allocation2], %s290
        %p292 = pneg %p63
        %p293 = pneg %p60
        %p294 = pneg %p84
        %p295 = pneg %p81
        %p296 = pneg %p105
        %p297 = pneg %p102
        %p298 = pneg %p126
        %p299 = pneg %p123
        %p300 = pneg %p154
        %p301 = pneg %p151
        %s302 = sand.u32 %s141, 1
        %s303 = scalar_lea.sflag [#allocation4], %s302
        %s304 = sand.u32 %s141, 1
        %s305 = smul.addr %s304, 16
        %s306 = scalar_lea.vmem [#allocation7], %s305
        %p307 = pneg %p182
        %p308 = pneg %p179
        %s309 = sand.u32 %s28, 1
        %s310 = scalar_lea.sflag [#allocation9], %s309
        %s311 = sand.u32 %s169, 1
        %s312 = smul.addr %s311, 16
        %s313 = scalar_lea.vmem [#allocation8], %s312
        %p314 = pneg %p210
        %p315 = pneg %p207
        %s316 = sand.u32 %s28, 1
        %s317 = scalar_lea.sflag [#allocation9], %s316
        %s318 = sand.u32 %s197, 1
        %s319 = smul.addr %s318, 16
        %s320 = scalar_lea.vmem [#allocation10], %s319
        %v322 = vld [vmem:[%s278] sm:$0xff]
        %v323 = vld [vmem:[%s1] sm:$0x1]
        %v324 = vld [vmem:[%s2] sm:$0x1]
        %vm325 = vcmask 261120
        %v326 = vsel %vm325, %v322, 0.0
        %327 = vadd.xlane.f32.xlu0 %v326
        %v328 = vpop.xlane.xlu0 %327
        %v329 = vrcp.pop 32.0
        %v330 = vmul.f32 %v328, %v329
        %v331 = vsub.f32 %v322, %v330
        %v332 = vmul.f32 %v331, %v331
        %v333 = vsel %vm325, %v332, 0.0
        %334 = vadd.xlane.f32.xlu0 %v333
        %v335 = vpop.xlane.xlu0 %334
        %v336 = vmul.f32 %v335, %v329
        %v337 = vadd.f32 %v336, 1e-05
        %v338 = vrsqrt.pop %v337
        %v339 = vmul.f32 %v331, %v338
        %v341 = vlaneseq
        %v342 = vshrl.u32 %v341, 7
        %v343 = vsub.s32 0, %v342
        %v344 = vrot.slane %v323, %v343
        %v346 = vmul.f32 %v339, %v344
        %v348 = vlaneseq
        %v349 = vshrl.u32 %v348, 7
        %v350 = vsub.s32 0, %v349
        %v351 = vrot.slane %v324, %v350
        %v353 = vadd.f32 %v346, %v351
        %v354 = vpack.c.bf16 %v353, %v353
        %v355 = vld [vmem:[#allocation5] sm:$0xf]
        %v356 = vld [vmem:[#allocation5 + $0x4] sm:$0xf]
        %v357 = vld [vmem:[#allocation5 + $0x8] sm:$0xf]
        %v358 = vld [vmem:[#allocation5 + $0xc] sm:$0xf]
        %v363 = vunpack.c.l.b16 %v355
        %v364 = vunpack.c.l.b16 %v356
        %v365 = vunpack.c.l.b16 %v357
        %v366 = vunpack.c.l.b16 %v358
        %v367 = vpack.c.b16 %v364, %v363
        %v368 = vpack.c.b16 %v366, %v365
        %v372 = vsel %vm325, %v354, 0
        %374 = vmatprep.subr.bf16.mxu0 0
        %375 = vmatpush1.bf16.msra.mxu0 0
        %376 = vmatprep.subr.bf16.mxu0 0
        %377 = vmatpush1.bf16.msra.mxu0 0
        %378 = vmatprep.subr.bf16.mxu0 0
        %379 = vmatpush1.bf16.msra.mxu0 0
        %380 = vmatprep.subr.bf16.mxu0 0
        %381 = vmatpush1.bf16.msra.mxu0 0
        %382 = vmatprep.subr.bf16.mxu0 0
        %383 = vmatpush1.bf16.msra.mxu0 0
        %384 = vmatprep.subr.bf16.mxu0 0
        %385 = vmatpush1.bf16.msra.mxu0 0
        %386 = vmatprep.subr.bf16.mxu0 0
        %387 = vmatpush1.bf16.msra.mxu0 %v368
        %388 = vmatprep.subr.bf16.mxu0 0
        %389 = vmatpush1.bf16.msra.mxu0 %v367
        %390 = vmatprep.subr.bf16.mxu0 0
        %391 = vmatpush2.bf16.msra.mxu0 0
        %392 = vmatprep.subr.bf16.mxu0 0
        %393 = vmatpush2.bf16.msra.mxu0 0
        %394 = vmatprep.subr.bf16.mxu0 0
        %395 = vmatpush2.bf16.msra.mxu0 0
        %396 = vmatprep.subr.bf16.mxu0 0
        %397 = vmatpush2.bf16.msra.mxu0 0
        %398 = vmatprep.subr.bf16.mxu0 0
        %399 = vmatpush2.bf16.msra.mxu0 0
        %400 = vmatprep.subr.bf16.mxu0 0
        %401 = vmatpush2.bf16.msra.mxu0 0
        %402 = vmatprep.subr.bf16.mxu0 0
        %403 = vmatpush2.bf16.msra.mxu0 0
        %404 = vmatprep.subr.bf16.mxu0 0
        %405 = vmatpush2.bf16.msra.mxu0 0
        %406 = vmatprep.mubr.bf16.mxu0 0
        %407 = vmatmul.mubr.bf16.gmra.mxu0 %v372
        %v408 = vpop.f32.mrf.mxu0
        %v409 = vadd.f32 0.0, %v408
        %v410 = vpop.f32.mrf.mxu0
        %v411 = vpop.f32.mrf.mxu0
        %v412 = vpop.f32.mrf.mxu0
        %413 = vdwg.mxu0
        %v414 = vpack.c.bf16 %v409, %v409
        %vm415 = vcmask 60416
        %416 = vst.msk [vmem:[%s306] sm:$0xf] %vm415, %v414
        %v418 = vunpack.c.l.b16 %v414
        %v419 = vpack.c.b16 %v418, %v418
        %420 = vrot.lane.b32.xlu0 %v419, 96
        %v421 = vpop.permute.xlu0 %420
        %423 = vst.msk [vmem:[%s313] sm:$0xf] %vm415, %v421
        %424 = vrot.lane.b32.xlu0 %v419, 64
        %v425 = vpop.permute.xlu0 %424
        %427 = vst.msk [vmem:[%s320] sm:$0xf] %vm415, %v425
        %428 = vrot.lane.b32.xlu0 %v419, 120
        %v429 = vpop.permute.xlu0 %428
        %s431 = scalar_lea.vmem %s306, 4 [#allocation7]
        %432 = vst.msk [vmem:[%s431] sm:$0xf] %vm415, %v429
        %433 = vrot.lane.b32.xlu0 %v419, 88
        %v434 = vpop.permute.xlu0 %433
        %s436 = scalar_lea.vmem %s313, 4 [#allocation8]
        %437 = vst.msk [vmem:[%s436] sm:$0xf] %vm415, %v434
        %438 = vrot.lane.b32.xlu0 %v419, 56
        %v439 = vpop.permute.xlu0 %438
        %s441 = scalar_lea.vmem %s320, 4 [#allocation10]
        %442 = vst.msk [vmem:[%s441] sm:$0xf] %vm415, %v439
        %443 = vrot.lane.b32.xlu0 %v419, 112
        %v444 = vpop.permute.xlu0 %443
        %s446 = scalar_lea.vmem %s306, 8 [#allocation7]
        %447 = vst.msk [vmem:[%s446] sm:$0xf] %vm415, %v444
        %448 = vrot.lane.b32.xlu0 %v419, 80
        %v449 = vpop.permute.xlu0 %448
        %s451 = scalar_lea.vmem %s313, 8 [#allocation8]
        %452 = vst.msk [vmem:[%s451] sm:$0xf] %vm415, %v449
        %453 = vrot.lane.b32.xlu0 %v419, 48
        %v454 = vpop.permute.xlu0 %453
        %s456 = scalar_lea.vmem %s320, 8 [#allocation10]
        %457 = vst.msk [vmem:[%s456] sm:$0xf] %vm415, %v454
        %458 = vrot.lane.b32.xlu0 %v419, 104
        %v459 = vpop.permute.xlu0 %458
        %s461 = scalar_lea.vmem %s306, 12 [#allocation7]
        %462 = vst.msk [vmem:[%s461] sm:$0xf] %vm415, %v459
        %463 = vrot.lane.b32.xlu0 %v419, 72
        %v464 = vpop.permute.xlu0 %463
        %s466 = scalar_lea.vmem %s313, 12 [#allocation8]
        %467 = vst.msk [vmem:[%s466] sm:$0xf] %vm415, %v464
        %468 = vrot.lane.b32.xlu0 %v419, 40
        %v469 = vpop.permute.xlu0 %468
        %s471 = scalar_lea.vmem %s320, 12 [#allocation10]
        %472 = vst.msk [vmem:[%s471] sm:$0xf] %vm415, %v469
        %s473 = sand.u32 %s141, 1
        %s474 = scalar_lea.sflag [#allocation4], %s473
        %s475 = sand.u32 %s141, 1
        %s476 = smul.addr %s475, 16
        %s477 = scalar_lea.vmem [#allocation7], %s476
        %s478 = sand.u32 %s28, 1
        %s479 = scalar_lea.sflag [#allocation9], %s478
        %s480 = sand.u32 %s169, 1
        %s481 = smul.addr %s480, 16
        %s482 = scalar_lea.vmem [#allocation8], %s481
        %s483 = sand.u32 %s28, 1
        %s484 = scalar_lea.sflag [#allocation9], %s483
        %s485 = sand.u32 %s197, 1
        %s486 = smul.addr %s485, 16
        %s487 = scalar_lea.vmem [#allocation10], %s486
        // Predicated region
        $region45: #{tpu_custom_call.1} parent=35 // pred_check
          %p488 = pneg %p151
        $region46: #{tpu_custom_call.1} parent=35 // pred_check_branch
          %490 = sbr.rel (%p488) target = $region48
        $region47: #{tpu_custom_call.1} parent=35 // pred_region
          %s492 = ssub.s32 256, 256
          %493 = vsyncadd %s474, %s492
          %s494 = smul.addr %s32, 4
          %s495 = sadd.s32 %s33, %s494
          %s496 = smul.addr %s495, 64
          %s497 = scalar_lea.hbm %s4, %s496
          %s498 = sshll.u32 %s477, 4
          %s499 = int_to_ptr.vmem [resolvable:$true] %s498
          %504 = dma.vmem_to_hbm [thread:$0]  %s499, 256, %s497, %s474, 64, 64, 4
        $region48: #{tpu_custom_call.1} parent=35 // pred_fallthru
          _
        // Predicated region
        $region49: #{tpu_custom_call.1} parent=35 // pred_check
          %p505 = pneg %p179
        $region50: #{tpu_custom_call.1} parent=35 // pred_check_branch
          %507 = sbr.rel (%p505) target = $region52
        $region51: #{tpu_custom_call.1} parent=35 // pred_region
          %s509 = ssub.s32 256, 256
          %510 = vsyncadd %s479, %s509
          %s511 = smul.addr %s32, 4
          %s512 = sadd.s32 %s33, %s511
          %s513 = smul.addr %s512, 64
          %s514 = scalar_lea.hbm %s5, %s513
          %s515 = sshll.u32 %s482, 4
          %s516 = int_to_ptr.vmem [resolvable:$true] %s515
          %521 = dma.vmem_to_hbm [thread:$0]  %s516, 256, %s514, %s479, 64, 64, 4
        $region52: #{tpu_custom_call.1} parent=35 // pred_fallthru
          _
        // Predicated region
        $region53: #{tpu_custom_call.1} parent=35 // pred_check
          %p522 = pneg %p207
        $region54: #{tpu_custom_call.1} parent=35 // pred_check_branch
          %524 = sbr.rel (%p522) target = $region56
        $region55: #{tpu_custom_call.1} parent=35 // pred_region
          %s526 = ssub.s32 256, 256
          %527 = vsyncadd %s484, %s526
          %s528 = smul.addr %s32, 4
          %s529 = sadd.s32 %s33, %s528
          %s530 = smul.addr %s529, 64
          %s531 = scalar_lea.hbm %s6, %s530
          %s532 = sshll.u32 %s487, 4
          %s533 = int_to_ptr.vmem [resolvable:$true] %s532
          %538 = dma.vmem_to_hbm [thread:$0]  %s533, 256, %s531, %s484, 64, 64, 4
        $region56: #{tpu_custom_call.1} parent=35 // pred_fallthru
          _
      $region36: #{tpu_custom_call.1} parent=5 // pred_fallthru
        _
      %p539 = scmp.le.s32.totalorder 2, %s23
      // Predicated region
      $region57: #{tpu_custom_call.1} parent=5 // pred_check
        %p540 = pneg %p539
      $region58: #{tpu_custom_call.1} parent=5 // pred_check_branch
        %542 = sbr.rel (%p540) target = $region60
      $region59: #{tpu_custom_call.1} parent=5 // pred_region
        %s543 = ssub.s32 %s23, 2
        // Predicated region
        $region61: #{tpu_custom_call.1} parent=59 // pred_check
          %p544 = pneg %p157
        $region62: #{tpu_custom_call.1} parent=59 // pred_check_branch
          %546 = sbr.rel (%p544) target = $region64
        $region63: #{tpu_custom_call.1} parent=59 // pred_region
          %s547 = sand.u32 %s142, 1
          %s548 = scalar_lea.sflag [#allocation4], %s547
          %s549 = sand.u32 %s142, 1
          %s550 = smul.addr %s549, 16
          %s551 = scalar_lea.vmem [#allocation7], %s550
          %552 = dma.done %s548, 256
        $region64: #{tpu_custom_call.1} parent=59 // pred_fallthru
          _
        // Predicated region
        $region65: #{tpu_custom_call.1} parent=59 // pred_check
          %p553 = pneg %p185
        $region66: #{tpu_custom_call.1} parent=59 // pred_check_branch
          %555 = sbr.rel (%p553) target = $region68
        $region67: #{tpu_custom_call.1} parent=59 // pred_region
          %s556 = sand.u32 %s29, 1
          %s557 = scalar_lea.sflag [#allocation9], %s556
          %s558 = sand.u32 %s170, 1
          %s559 = smul.addr %s558, 16
          %s560 = scalar_lea.vmem [#allocation8], %s559
          %561 = dma.done %s557, 256
        $region68: #{tpu_custom_call.1} parent=59 // pred_fallthru
          _
        // Predicated region
        $region69: #{tpu_custom_call.1} parent=59 // pred_check
          %p562 = pneg %p213
        $region70: #{tpu_custom_call.1} parent=59 // pred_check_branch
          %564 = sbr.rel (%p562) target = $region72
        $region71: #{tpu_custom_call.1} parent=59 // pred_region
          %s565 = sand.u32 %s29, 1
          %s566 = scalar_lea.sflag [#allocation9], %s565
          %s567 = sand.u32 %s198, 1
          %s568 = smul.addr %s567, 16
          %s569 = scalar_lea.vmem [#allocation10], %s568
          %570 = dma.done %s566, 256
        $region72: #{tpu_custom_call.1} parent=59 // pred_fallthru
          _
      $region60: #{tpu_custom_call.1} parent=5 // pred_fallthru
        _
    $region6: #{tpu_custom_call.1} parent=1 // loop_footer
      %s27 = sadd.s32 1, %s23
    $region7: #{tpu_custom_call.1} parent=1 // loop_footer_branch
      %22 = sbr.rel target = $region3
    $region8: #{tpu_custom_call.1} parent=1 // loop_exit
      _
    %571 = vsyncpa [#allocation3], 1
    %s572 = scalar_lea.sflag [#allocation3], 1
    %573 = vsyncpa %s572, 1
    %574 = vsyncpa [#allocation6], 1
    %575 = vsyncpa [#allocation4], 1
    %s576 = scalar_lea.sflag [#allocation4], 1
    %577 = vsyncpa %s576, 1
    %578 = vsyncpa [#allocation9], 1
    %s579 = scalar_lea.sflag [#allocation9], 1
    %580 = vsyncpa %s579, 1

</llo_original>
